<compile_context>
chip_gen: v5e
topology: v5e:2x2
jax: 0.10.0
libtpu: 0.0.40
codegen_flags: <defaults>
</compile_context>

<pallas_src>
import jax
import jax.numpy as jnp
from jax import lax
from jax.experimental import pallas as pl
from jax.experimental.pallas import tpu as pltpu


def _make_mcc_kernel(C, s_tile, S, need_mask):
    def kernel(x_ref, t_ref, o_ref, acc_ref):
        s = pl.program_id(1)

        @pl.when(s == 0)
        def _init():
            acc_ref[...] = jnp.zeros_like(acc_ref)

        x = x_ref[0].astype(jnp.float32)   # (C, s_tile)
        t = t_ref[0].astype(jnp.float32)   # (C, s_tile)

        # Softmax over the channel (sublane) axis.
        m = jnp.max(x, axis=0, keepdims=True)
        e = jnp.exp(x - m)
        inv = pl.reciprocal(jnp.sum(e, axis=0, keepdims=True))  # exact
        p = e * inv

        if need_mask:
            # Zero out softmax of zero-padded spatial columns (t is already 0
            # there, so p*t and t need no mask).
            col = s * s_tile + lax.broadcasted_iota(jnp.int32, (C, s_tile), 1)
            p = jnp.where(col < S, p, 0.0)

        # Pure VPU element-wise accumulation; no cross-lane work per step.
        acc_ref[0] += p
        acc_ref[1] += t
        acc_ref[2] += p * t

        @pl.when(s == pl.num_programs(1) - 1)
        def _finalize():
            ones_row = jnp.ones((1, 128), jnp.float32)
            o_ref[0] = jnp.concatenate(
                [jnp.sum(acc_ref[0]) * ones_row,
                 jnp.sum(acc_ref[1]) * ones_row,
                 jnp.sum(acc_ref[2]) * ones_row],
                axis=0)

    return kernel


def mcc_loss(inputs_nchw, targets_nchw, *, target_block_bytes=512 * 1024):
    N, C, H, W = inputs_nchw.shape
    S = H * W

    itemsize = jnp.dtype(inputs_nchw.dtype).itemsize
    s_ceil = ((S + 127) // 128) * 128
    s_tile = max(128, (target_block_bytes // (C * itemsize)) // 128 * 128)
    s_tile = min(s_tile, s_ceil)
    S_pad = ((S + s_tile - 1) // s_tile) * s_tile
    T = S_pad // s_tile

    # Free, contiguous view: NCHW -> (N, C, H*W).
    x = inputs_nchw.reshape(N, C, S)
    t = targets_nchw.reshape(N, C, S)
    if S_pad != S:
        pad = ((0, 0), (0, 0), (0, S_pad - S))
        x = jnp.pad(x, pad)
        t = jnp.pad(t, pad)

    kernel = _make_mcc_kernel(C, s_tile, S, S_pad != S)

    partials = pl.pallas_call(
        kernel,
        out_shape=jax.ShapeDtypeStruct((N, 3, 128), jnp.float32),
        grid_spec=pltpu.PrefetchScalarGridSpec(
            num_scalar_prefetch=0,
            grid=(N, T),
            in_specs=[
                pl.BlockSpec((1, C, s_tile), lambda n, s: (n, 0, s)),
                pl.BlockSpec((1, C, s_tile), lambda n, s: (n, 0, s)),
            ],
            out_specs=pl.BlockSpec((1, 3, 128), lambda n, s: (n, 0, 0)),
            scratch_shapes=[pltpu.VMEM((3, C, s_tile), jnp.float32)],
        ),
        compiler_params=pltpu.CompilerParams(
            dimension_semantics=("parallel", "arbitrary")),
    )(x, t)

    per_batch = partials[:, :, 0]                # (N, 3) lane-0 of each slab
    s_p = jnp.sum(per_batch[:, 0])
    s_t = jnp.sum(per_batch[:, 1])
    s_pt = jnp.sum(per_batch[:, 2])

    count = jnp.float32(N * C * H * W)
    tp = s_pt
    fp = s_p - s_pt
    fn = s_t - s_pt
    tn = count - s_p - s_t + s_pt

    # TODO(synk): PyTorch promotes tp/tn/fp/fn to float64 (.double()) before
    # this scalar math; JAX x64 is disabled by default so we stay in float32
    # (values are well within f32 range at these sizes).
    numerator = tp * tn - fp * fn
    total = (tp + fp) * (tp + fn) * (tn + fp) * (tn + fn)
    mcc = numerator / (jnp.sqrt(total) + 1.0)
    return 1.0 - mcc


if __name__ == "__main__":
    key = jax.random.PRNGKey(0)
    k1, k2 = jax.random.split(key)

    N, C, H, W = 2, 4, 16, 16
    inputs = jax.random.normal(k1, (N, C, H, W), dtype=jnp.float32)
    labels = jax.random.randint(k2, (N, H, W), 0, C)
    targets = jnp.transpose(
        jax.nn.one_hot(labels, C, dtype=jnp.float32), (0, 3, 1, 2))

    loss = jax.block_until_ready(mcc_loss(inputs, targets))

    # Pure-JAX reference of the PyTorch forward for a correctness check.
    p = jax.nn.softmax(inputs, axis=1)
    tp = jnp.sum(p * targets)
    tn = jnp.sum((1.0 - p) * (1.0 - targets))
    fp = jnp.sum(p * (1.0 - targets))
    fn = jnp.sum((1.0 - p) * targets)
    ref = 1.0 - (tp * tn - fp * fn) / (
        jnp.sqrt((tp + fp) * (tp + fn) * (tn + fp) * (tn + fn)) + 1.0)

    assert jnp.allclose(loss, ref, rtol=1e-5, atol=1e-5), (loss, ref)
    print("KERNEL_OK")
</pallas_src>

<mosaic_0001>
module attributes {stable_mosaic.version = 11 : i64} {
  func.func @kernel(%arg0: i32, %arg1: i32, %arg2: memref<1x4x256xf32, #tpu.memory_space<vmem>>, %arg3: memref<1x4x256xf32, #tpu.memory_space<vmem>>, %arg4: memref<1x3x128xf32, #tpu.memory_space<vmem>>, %arg5: memref<3x4x256xf32, #tpu.memory_space<vmem>>) attributes {dimension_semantics = [#tpu.dimension_semantics<parallel>, #tpu.dimension_semantics<arbitrary>], iteration_bounds = array<i64: 2, 1>, scalar_prefetch = 0 : i64, scratch_operands = 1 : i64, tpu.core_type = #tpu.core_type<tc>, window_params = [{transform_indices = @transform_0, window_bounds = array<i64: 1, 4, 256>}, {transform_indices = @transform_1, window_bounds = array<i64: 1, 4, 256>}, {transform_indices = @transform_2, window_bounds = array<i64: 1, 3, 128>}]} {
    %c0_i32 = arith.constant 0 : i32
    %0 = arith.cmpi eq, %arg1, %c0_i32 : i32
    %1 = arith.extui %0 : i1 to i32
    %c0_i32_0 = arith.constant 0 : i32
    %2 = arith.cmpi ne, %1, %c0_i32_0 : i32
    scf.if %2 {
      %cst_25 = arith.constant 0.000000e+00 : f32
      %39 = vector.broadcast %cst_25 : f32 to vector<3x4x256xf32>
      %c0_26 = arith.constant 0 : index
      %c0_27 = arith.constant 0 : index
      %c0_28 = arith.constant 0 : index
      %40 = vector.load %arg5[%c0_26, %c0_27, %c0_28] : memref<3x4x256xf32, #tpu.memory_space<vmem>>, vector<3x4x256xf32>
      tpu.vector_store %arg5[%c0_26, %c0_27, %c0_28], %39 {strides = array<i32>} : memref<3x4x256xf32, #tpu.memory_space<vmem>>, vector<3x4x256xf32>,
    } else {
    }
    %c0 = arith.constant 0 : index
    %c0_1 = arith.constant 0 : index
    %c0_2 = arith.constant 0 : index
    %3 = vector.load %arg2[%c0, %c0_1, %c0_2] : memref<1x4x256xf32, #tpu.memory_space<vmem>>, vector<1x4x256xf32>
    %4 = vector.shape_cast %3 : vector<1x4x256xf32> to vector<4x256xf32>
    %c0_3 = arith.constant 0 : index
    %c0_4 = arith.constant 0 : index
    %c0_5 = arith.constant 0 : index
    %5 = vector.load %arg3[%c0_3, %c0_4, %c0_5] : memref<1x4x256xf32, #tpu.memory_space<vmem>>, vector<1x4x256xf32>
    %6 = vector.shape_cast %5 : vector<1x4x256xf32> to vector<4x256xf32>
    %cst = arith.constant dense<0xFF800000> : vector<256xf32>
    %7 = vector.multi_reduction <maximumf>, %4, %cst [0] : vector<4x256xf32> to vector<256xf32>
    %8 = vector.shape_cast %7 : vector<256xf32> to vector<1x256xf32>
    %9 = vector.broadcast %8 : vector<1x256xf32> to vector<4x256xf32>
    %10 = arith.subf %4, %9 : vector<4x256xf32>
    %11 = math.exp %10 : vector<4x256xf32>
    %cst_6 = arith.constant dense<0.000000e+00> : vector<256xf32>
    %12 = vector.multi_reduction <add>, %11, %cst_6 [0] : vector<4x256xf32> to vector<256xf32>
    %13 = vector.shape_cast %12 : vector<256xf32> to vector<1x256xf32>
    %14 = tpu.reciprocal %13 : vector<1x256xf32> -> vector<1x256xf32>
    %15 = vector.broadcast %14 : vector<1x256xf32> to vector<4x256xf32>
    %16 = arith.mulf %11, %15 : vector<4x256xf32>
    %c0_7 = arith.constant 0 : index
    %c0_8 = arith.constant 0 : index
    %c0_9 = arith.constant 0 : index
    %17 = vector.load %arg5[%c0_7, %c0_8, %c0_9] : memref<3x4x256xf32, #tpu.memory_space<vmem>>, vector<1x4x256xf32>
    %18 = vector.shape_cast %17 : vector<1x4x256xf32> to vector<4x256xf32>
    %19 = arith.addf %18, %16 : vector<4x256xf32>
    %c0_10 = arith.constant 0 : index
    %c0_11 = arith.constant 0 : index
    %c0_12 = arith.constant 0 : index
    %20 = vector.load %arg5[%c0_10, %c0_11, %c0_12] : memref<3x4x256xf32, #tpu.memory_space<vmem>>, vector<1x4x256xf32>
    %21 = vector.shape_cast %20 : vector<1x4x256xf32> to vector<4x256xf32>
    %22 = vector.shape_cast %19 : vector<4x256xf32> to vector<1x4x256xf32>
    tpu.vector_store %arg5[%c0_10, %c0_11, %c0_12], %22 {strides = array<i32>} : memref<3x4x256xf32, #tpu.memory_space<vmem>>, vector<1x4x256xf32>,
    %c1 = arith.constant 1 : index
    %c0_13 = arith.constant 0 : index
    %c0_14 = arith.constant 0 : index
    %23 = vector.load %arg5[%c1, %c0_13, %c0_14] : memref<3x4x256xf32, #tpu.memory_space<vmem>>, vector<1x4x256xf32>
    %24 = vector.shape_cast %23 : vector<1x4x256xf32> to vector<4x256xf32>
    %25 = arith.addf %24, %6 : vector<4x256xf32>
    %c1_15 = arith.constant 1 : index
    %c0_16 = arith.constant 0 : index
    %c0_17 = arith.constant 0 : index
    %26 = vector.load %arg5[%c1_15, %c0_16, %c0_17] : memref<3x4x256xf32, #tpu.memory_space<vmem>>, vector<1x4x256xf32>
    %27 = vector.shape_cast %26 : vector<1x4x256xf32> to vector<4x256xf32>
    %28 = vector.shape_cast %25 : vector<4x256xf32> to vector<1x4x256xf32>
    tpu.vector_store %arg5[%c1_15, %c0_16, %c0_17], %28 {strides = array<i32>} : memref<3x4x256xf32, #tpu.memory_space<vmem>>, vector<1x4x256xf32>,
    %c2 = arith.constant 2 : index
    %c0_18 = arith.constant 0 : index
    %c0_19 = arith.constant 0 : index
    %29 = vector.load %arg5[%c2, %c0_18, %c0_19] : memref<3x4x256xf32, #tpu.memory_space<vmem>>, vector<1x4x256xf32>
    %30 = vector.shape_cast %29 : vector<1x4x256xf32> to vector<4x256xf32>
    %31 = arith.mulf %16, %6 : vector<4x256xf32>
    %32 = arith.addf %30, %31 : vector<4x256xf32>
    %c2_20 = arith.constant 2 : index
    %c0_21 = arith.constant 0 : index
    %c0_22 = arith.constant 0 : index
    %33 = vector.load %arg5[%c2_20, %c0_21, %c0_22] : memref<3x4x256xf32, #tpu.memory_space<vmem>>, vector<1x4x256xf32>
    %34 = vector.shape_cast %33 : vector<1x4x256xf32> to vector<4x256xf32>
    %35 = vector.shape_cast %32 : vector<4x256xf32> to vector<1x4x256xf32>
    tpu.vector_store %arg5[%c2_20, %c0_21, %c0_22], %35 {strides = array<i32>} : memref<3x4x256xf32, #tpu.memory_space<vmem>>, vector<1x4x256xf32>,
    %c0_i32_23 = arith.constant 0 : i32
    %36 = arith.cmpi eq, %arg1, %c0_i32_23 : i32
    %37 = arith.extui %36 : i1 to i32
    %c0_i32_24 = arith.constant 0 : i32
    %38 = arith.cmpi ne, %37, %c0_i32_24 : i32
    scf.if %38 {
      %cst_25 = arith.constant 1.000000e+00 : f32
      %39 = vector.broadcast %cst_25 : f32 to vector<1x128xf32>
      %c0_26 = arith.constant 0 : index
      %c0_27 = arith.constant 0 : index
      %c0_28 = arith.constant 0 : index
      %40 = vector.load %arg5[%c0_26, %c0_27, %c0_28] : memref<3x4x256xf32, #tpu.memory_space<vmem>>, vector<1x4x256xf32>
      %41 = vector.shape_cast %40 : vector<1x4x256xf32> to vector<4x256xf32>
      %42 = vector.shape_cast %41 : vector<4x256xf32> to vector<1x4x256xf32>
      %cst_29 = arith.constant dense<0.000000e+00> : vector<1xf32>
      %43 = vector.multi_reduction <add>, %42, %cst_29 [1, 2] : vector<1x4x256xf32> to vector<1xf32>
      %44 = vector.shape_cast %43 : vector<1xf32> to vector<1x1x1xf32>
      %45 = vector.extract %44[0, 0, 0] : f32 from vector<1x1x1xf32>
      %46 = vector.broadcast %45 : f32 to vector<1x128xf32>
      %47 = arith.mulf %46, %39 : vector<1x128xf32>
      %c1_30 = arith.constant 1 : index
      %c0_31 = arith.constant 0 : index
      %c0_32 = arith.constant 0 : index
      %48 = vector.load %arg5[%c1_30, %c0_31, %c0_32] : memref<3x4x256xf32, #tpu.memory_space<vmem>>, vector<1x4x256xf32>
      %49 = vector.shape_cast %48 : vector<1x4x256xf32> to vector<4x256xf32>
      %50 = vector.shape_cast %49 : vector<4x256xf32> to vector<1x4x256xf32>
      %cst_33 = arith.constant dense<0.000000e+00> : vector<1xf32>
      %51 = vector.multi_reduction <add>, %50, %cst_33 [1, 2] : vector<1x4x256xf32> to vector<1xf32>
      %52 = vector.shape_cast %51 : vector<1xf32> to vector<1x1x1xf32>
      %53 = vector.extract %52[0, 0, 0] : f32 from vector<1x1x1xf32>
      %54 = vector.broadcast %53 : f32 to vector<1x128xf32>
      %55 = arith.mulf %54, %39 : vector<1x128xf32>
      %c2_34 = arith.constant 2 : index
      %c0_35 = arith.constant 0 : index
      %c0_36 = arith.constant 0 : index
      %56 = vector.load %arg5[%c2_34, %c0_35, %c0_36] : memref<3x4x256xf32, #tpu.memory_space<vmem>>, vector<1x4x256xf32>
      %57 = vector.shape_cast %56 : vector<1x4x256xf32> to vector<4x256xf32>
      %58 = vector.shape_cast %57 : vector<4x256xf32> to vector<1x4x256xf32>
      %cst_37 = arith.constant dense<0.000000e+00> : vector<1xf32>
      %59 = vector.multi_reduction <add>, %58, %cst_37 [1, 2] : vector<1x4x256xf32> to vector<1xf32>
      %60 = vector.shape_cast %59 : vector<1xf32> to vector<1x1x1xf32>
      %61 = vector.extract %60[0, 0, 0] : f32 from vector<1x1x1xf32>
      %62 = vector.broadcast %61 : f32 to vector<1x128xf32>
      %63 = arith.mulf %62, %39 : vector<1x128xf32>
      %64 = tpu.concatenate %47, %55, %63 in 0 : vector<1x128xf32>, vector<1x128xf32>, vector<1x128xf32> -> vector<3x128xf32>
      %c0_38 = arith.constant 0 : index
      %c0_39 = arith.constant 0 : index
      %c0_40 = arith.constant 0 : index
      %65 = vector.load %arg4[%c0_38, %c0_39, %c0_40] : memref<1x3x128xf32, #tpu.memory_space<vmem>>, vector<1x3x128xf32>
      %66 = vector.shape_cast %65 : vector<1x3x128xf32> to vector<3x128xf32>
      %67 = vector.shape_cast %64 : vector<3x128xf32> to vector<1x3x128xf32>
      tpu.vector_store %arg4[%c0_38, %c0_39, %c0_40], %67 {strides = array<i32>} : memref<1x3x128xf32, #tpu.memory_space<vmem>>, vector<1x3x128xf32>,
    } else {
    }
    return
  }
  func.func @transform_0(%arg0: i32, %arg1: i32) -> (i32, i32, i32) {
    %c0_i32 = arith.constant 0 : i32
    %c0_i32_0 = arith.constant 0 : i32
    return %arg0, %c0_i32, %arg1 : i32, i32, i32
  }
  func.func @transform_1(%arg0: i32, %arg1: i32) -> (i32, i32, i32) {
    %c0_i32 = arith.constant 0 : i32
    %c0_i32_0 = arith.constant 0 : i32
    return %arg0, %c0_i32, %arg1 : i32, i32, i32
  }
  func.func @transform_2(%arg0: i32, %arg1: i32) -> (i32, i32, i32) {
    %c0_i32 = arith.constant 0 : i32
    %c0_i32_0 = arith.constant 0 : i32
    %c0_i32_1 = arith.constant 0 : i32
    return %arg0, %c0_i32, %c0_i32_0 : i32, i32, i32
  }
}

</mosaic_0001>

<llo_original>
// kernel: tpu_custom_call.1
$region0: #{tpu_custom_call.1}
  #allocation0 [shape = 'u32[]', space=smem, size = 0x4, offset = 0x4, fixed_abs, tag = 'smem constant byte address 0x4 - core index']
  #allocation1 [shape = 'u32[72,128]{1,0:T(1,128)}', space=vmem, size = 0x9000, scoped, tag = 'internal scratch']
  #allocation2 [shape = 'f32[3,4,256]{2,1,0:T(4,128)}', space=vmem, size = 0x3000, scoped, tag = 'scratch operand']
  %s0 = inlined_call_operand.hbm [shape: f32[2,4,256], index: 0, kind: input, shape index: {}]
  %s1 = inlined_call_operand.hbm [shape: f32[2,4,256], index: 1, kind: input, shape index: {}]
  %s2 = inlined_call_operand.vmem [shape: f32[2,3,128], index: 2, kind: output, shape index: {}]
  %s3 = sld [smem:[#allocation0]]
  $region57: #{tpu_custom_call.1} parent=0
    _
  %s5 = ssub.s32 1, %s3
  %s6 = scalar_select 0, %s5, %s3
  $region1: #{tpu_custom_call.1} parent=0
    #allocation3 [shape = 'u8[8192]{0}', space=vmem, size = 0x2000, scoped, tag = 'input window, operand 0']
    #allocation4 [shape = 's32[2]{0}', space=sflag, size = 0x8, scoped, tag = 'scoped memory for tpu_custom_call.1']
    #allocation5 [shape = 'u8[8192]{0}', space=vmem, size = 0x2000, scoped, tag = 'input window, operand 1']
    #allocation6 [shape = 's32[2]{0}', space=sflag, size = 0x8, scoped, tag = 'scoped memory for tpu_custom_call.1']
    %7 = vsyncpa [#allocation4], 0
    %s8 = scalar_lea.sflag [#allocation4], 1
    %9 = vsyncpa %s8, 0
    %10 = vsyncpa [#allocation6], 0
    %s11 = scalar_lea.sflag [#allocation6], 1
    %12 = vsyncpa %s11, 0
    loop: start=0, step=1, limit=4
    $region2: #{tpu_custom_call.1} parent=1 // loop_pre_header
      _
    $region3: #{tpu_custom_call.1} parent=1 // loop_header
      %s14 = sphi 0, %s18
      %p15 = scmp.ge.s32.totalorder %s14, 4
      %s21 = sphi 0, %s33
      %s22 = sphi 0, %s29
      %s23 = sphi 0, %s21
      %s24 = sphi 0, %s22
      %s25 = sphi 0, %s23
      %s26 = sphi 0, %s24
      %s38 = sphi 0, %s40
      %s41 = sphi 0, %s38
      %s42 = sphi 0, %s41
      %s58 = sphi 0, %s42
      %s66 = sphi 0, %s68
      %s69 = sphi 0, %s66
      %s70 = sphi 0, %s69
      %s86 = sphi 0, %s70
      %s92 = sphi 0, %s94
      %s95 = sphi 0, %s92
      %s96 = sphi 0, %s95
      %s112 = sphi 0, %s96
    $region4: #{tpu_custom_call.1} parent=1 // loop_header_branch
      %17 = sbr.rel (%p15) target = $region8
    $region5: #{tpu_custom_call.1} parent=1 // loop_body
      %s19 = ssub.s32 %s14, 1
      %s20 = ssub.s32 %s14, 2
      %s27 = sadd.s32 1, %s22
      %p28 = scmp.ge.s32.totalorder %s27, 1
      %s29 = scalar_select %p28, 0, %s27
      %s30 = sadd.s32 1, %s21
      %s31 = scalar_select %p28, %s30, %s21
      %p32 = scmp.ge.s32.totalorder %s31, 2
      %s33 = scalar_select %p32, 0, %s31
      %s34 = ssub.s32 %s21, %s33
      %s35 = ssub.s32 %s22, %s29
      %s36 = sor.u32 %s34, %s35
      %p37 = scmp.eq.s32.totalorder %s36, 0
      %s39 = sadd.s32 %s38, 1
      %s40 = scalar_select %p37, %s38, %s39
      %p43 = pneg %p37
      %p44 = scmp.eq.s32.totalorder %s14, 1
      %p45 = por %p43, %p44
      %p46 = scmp.ne.s32.totalorder %s38, %s41
      %p47 = scmp.eq.s32.totalorder %s14, 0
      %p48 = por %p46, %p47
      %p49 = scmp.ne.s32.totalorder %s38, %s41
      %p50 = scmp.eq.s32.totalorder %s19, 1
      %p51 = por %p49, %p50
      %p52 = scmp.ne.s32.totalorder %s41, %s42
      %p53 = scmp.eq.s32.totalorder %s19, 0
      %p54 = por %p52, %p53
      %p55 = scmp.ne.s32.totalorder %s41, %s42
      %p56 = scmp.eq.s32.totalorder %s20, 1
      %p57 = por %p55, %p56
      %p59 = scmp.ne.s32.totalorder %s42, %s58
      %p60 = scmp.eq.s32.totalorder %s20, 0
      %p61 = por %p59, %p60
      %s62 = ssub.s32 %s21, %s33
      %s63 = ssub.s32 %s22, %s29
      %s64 = sor.u32 %s62, %s63
      %p65 = scmp.eq.s32.totalorder %s64, 0
      %s67 = sadd.s32 %s66, 1
      %s68 = scalar_select %p65, %s66, %s67
      %p71 = pneg %p65
      %p72 = scmp.eq.s32.totalorder %s14, 1
      %p73 = por %p71, %p72
      %p74 = scmp.ne.s32.totalorder %s66, %s69
      %p75 = scmp.eq.s32.totalorder %s14, 0
      %p76 = por %p74, %p75
      %p77 = scmp.ne.s32.totalorder %s66, %s69
      %p78 = scmp.eq.s32.totalorder %s19, 1
      %p79 = por %p77, %p78
      %p80 = scmp.ne.s32.totalorder %s69, %s70
      %p81 = scmp.eq.s32.totalorder %s19, 0
      %p82 = por %p80, %p81
      %p83 = scmp.ne.s32.totalorder %s69, %s70
      %p84 = scmp.eq.s32.totalorder %s20, 1
      %p85 = por %p83, %p84
      %p87 = scmp.ne.s32.totalorder %s70, %s86
      %p88 = scmp.eq.s32.totalorder %s20, 0
      %p89 = por %p87, %p88
      %s90 = ssub.s32 %s21, %s33
      %p91 = scmp.eq.s32.totalorder %s90, 0
      %s93 = sadd.s32 %s92, 1
      %s94 = scalar_select %p91, %s92, %s93
      %p97 = pneg %p91
      %p98 = scmp.eq.s32.totalorder %s14, 1
      %p99 = por %p97, %p98
      %p100 = scmp.ne.s32.totalorder %s92, %s95
      %p101 = scmp.eq.s32.totalorder %s14, 0
      %p102 = por %p100, %p101
      %p103 = scmp.ne.s32.totalorder %s92, %s95
      %p104 = scmp.eq.s32.totalorder %s19, 1
      %p105 = por %p103, %p104
      %p106 = scmp.ne.s32.totalorder %s95, %s96
      %p107 = scmp.eq.s32.totalorder %s19, 0
      %p108 = por %p106, %p107
      %p109 = scmp.ne.s32.totalorder %s95, %s96
      %p110 = scmp.eq.s32.totalorder %s20, 1
      %p111 = por %p109, %p110
      %p113 = scmp.ne.s32.totalorder %s96, %s112
      %p114 = scmp.eq.s32.totalorder %s20, 0
      %p115 = por %p113, %p114
      %p116 = scmp.le.s32.totalorder 1, %s14
      %p117 = scmp.lt.s32.totalorder %s14, 3
      %p118 = pnand %p116, %p117
      %p119 = pneg %p118
      // Predicated region
      $region9: #{tpu_custom_call.1} parent=5 // pred_check
        _
      $region10: #{tpu_custom_call.1} parent=5 // pred_check_branch
        %121 = sbr.rel (%p118) target = $region12
      $region11: #{tpu_custom_call.1} parent=5 // pred_region
        %s122 = ssub.s32 %s14, 1
      $region12: #{tpu_custom_call.1} parent=5 // pred_fallthru
        _
      %p123 = scmp.lt.s32.totalorder %s14, 2
      // Predicated region
      $region13: #{tpu_custom_call.1} parent=5 // pred_check
        %p124 = pneg %p123
      $region14: #{tpu_custom_call.1} parent=5 // pred_check_branch
        %126 = sbr.rel (%p124) target = $region16
      $region15: #{tpu_custom_call.1} parent=5 // pred_region
        // Predicated region
        $region17: #{tpu_custom_call.1} parent=15 // pred_check
          %p127 = pneg %p48
        $region18: #{tpu_custom_call.1} parent=15 // pred_check_branch
          %129 = sbr.rel (%p127) target = $region20
        $region19: #{tpu_custom_call.1} parent=15 // pred_region
          %s130 = sand.u32 %s38, 1
          %s131 = scalar_lea.sflag [#allocation4], %s130
          %s132 = sand.u32 %s38, 1
          %s133 = smul.addr %s132, 8
          %s134 = scalar_lea.vmem [#allocation3], %s133
          %s135 = smul.u32 2, %s22
          %137 = vsyncadd %s131, 0
          %s138 = smul.addr %s21, 2
          %s139 = sadd.s32 %s135, %s138
          %s140 = smul.addr %s139, 4
          %s141 = scalar_lea.hbm %s0, %s140
          %s143 = sshll.u32 %s141, 4
          %s144 = int_to_ptr.hbm [resolvable:$true] %s143
          %s145 = sshll.u32 %s134, 4
          %s146 = int_to_ptr.vmem [resolvable:$true] %s145
          %148 = dma.hbm_to_vmem [thread:$0]  %s144, 128, %s146, %s131
        $region20: #{tpu_custom_call.1} parent=15 // pred_fallthru
          _
        // Predicated region
        $region21: #{tpu_custom_call.1} parent=15 // pred_check
          %p149 = pneg %p76
        $region22: #{tpu_custom_call.1} parent=15 // pred_check_branch
          %151 = sbr.rel (%p149) target = $region24
        $region23: #{tpu_custom_call.1} parent=15 // pred_region
          %s152 = sand.u32 %s66, 1
          %s153 = scalar_lea.sflag [#allocation6], %s152
          %s154 = sand.u32 %s66, 1
          %s155 = smul.addr %s154, 8
          %s156 = scalar_lea.vmem [#allocation5], %s155
          %s157 = smul.u32 2, %s22
          %159 = vsyncadd %s153, 0
          %s160 = smul.addr %s21, 2
          %s161 = sadd.s32 %s157, %s160
          %s162 = smul.addr %s161, 4
          %s163 = scalar_lea.hbm %s1, %s162
          %s165 = sshll.u32 %s163, 4
          %s166 = int_to_ptr.hbm [resolvable:$true] %s165
          %s167 = sshll.u32 %s156, 4
          %s168 = int_to_ptr.vmem [resolvable:$true] %s167
          %170 = dma.hbm_to_vmem [thread:$0]  %s166, 128, %s168, %s153
        $region24: #{tpu_custom_call.1} parent=15 // pred_fallthru
          _
      $region16: #{tpu_custom_call.1} parent=5 // pred_fallthru
        _
      %p171 = scmp.le.s32.totalorder 1, %s14
      %p172 = scmp.lt.s32.totalorder %s14, 3
      %p173 = pnand %p171, %p172
      %p174 = pneg %p173
      // Predicated region
      $region25: #{tpu_custom_call.1} parent=5 // pred_check
        _
      $region26: #{tpu_custom_call.1} parent=5 // pred_check_branch
        %176 = sbr.rel (%p173) target = $region28
      $region27: #{tpu_custom_call.1} parent=5 // pred_region
        %s177 = ssub.s32 %s14, 1
        %s178 = sand.u32 %s41, 1
        %s179 = scalar_lea.sflag [#allocation4], %s178
        %s180 = sand.u32 %s41, 1
        %s181 = smul.addr %s180, 8
        %s182 = scalar_lea.vmem [#allocation3], %s181
        // Predicated region
        $region29: #{tpu_custom_call.1} parent=27 // pred_check
          %p183 = pneg %p54
        $region30: #{tpu_custom_call.1} parent=27 // pred_check_branch
          %185 = sbr.rel (%p183) target = $region32
        $region31: #{tpu_custom_call.1} parent=27 // pred_region
          %187 = dma.done %s179, 128
        $region32: #{tpu_custom_call.1} parent=27 // pred_fallthru
          _
        %s188 = sand.u32 %s69, 1
        %s189 = scalar_lea.sflag [#allocation6], %s188
        %s190 = sand.u32 %s69, 1
        %s191 = smul.addr %s190, 8
        %s192 = scalar_lea.vmem [#allocation5], %s191
        // Predicated region
        $region33: #{tpu_custom_call.1} parent=27 // pred_check
          %p193 = pneg %p82
        $region34: #{tpu_custom_call.1} parent=27 // pred_check_branch
          %195 = sbr.rel (%p193) target = $region36
        $region35: #{tpu_custom_call.1} parent=27 // pred_region
          %197 = dma.done %s189, 128
        $region36: #{tpu_custom_call.1} parent=27 // pred_fallthru
          _
        %s198 = sand.u32 %s41, 1
        %s199 = scalar_lea.sflag [#allocation4], %s198
        %s200 = sand.u32 %s41, 1
        %s201 = smul.addr %s200, 8
        %s202 = scalar_lea.vmem [#allocation3], %s201
        %p203 = pneg %p54
        %p204 = pneg %p51
        %s205 = sand.u32 %s69, 1
        %s206 = scalar_lea.sflag [#allocation6], %s205
        %s207 = sand.u32 %s69, 1
        %s208 = smul.addr %s207, 8
        %s209 = scalar_lea.vmem [#allocation5], %s208
        %p210 = pneg %p82
        %p211 = pneg %p79
        %p212 = pneg %p108
        %p213 = pneg %p105
        %p214 = scmp.lt.s32.totalorder %s23, 1
        %s215 = scalar_select %p214, %s23, 1
        %s216 = smul.addr %s215, 4
        %s217 = scalar_lea.vmem %s2, %s216
        %s218 = smul.u32 2, %s24
        %s219 = smul.u32 2, %s24
        %p220 = scmp.lt.s32.totalorder %s23, 1
        %s221 = scalar_select %p220, %s23, 1
        %s222 = smul.addr %s221, 4
        %s223 = scalar_lea.vmem %s2, %s222
        %p224 = scmp.eq.s32.totalorder %s24, 0
        // Predicated region
        $region37: #{tpu_custom_call.1} parent=27 // pred_check
          %p225 = pneg %p224
        $region38: #{tpu_custom_call.1} parent=27 // pred_check_branch
          %227 = sbr.rel (%p225) target = $region40
        $region39: #{tpu_custom_call.1} parent=27 // pred_region
          %228 = vst [vmem:[#allocation2] sm:$0xff] 0.0
          %229 = vst [vmem:[#allocation2 + $0x8] sm:$0xff] 0.0
          %230 = vst [vmem:[#allocation2 + $0x10] sm:$0xff] 0.0
        $region40: #{tpu_custom_call.1} parent=27 // pred_fallthru
          _
        %v231 = vld [vmem:[%s182] sm:$0xff]
        %v232 = vld [vmem:[%s192] sm:$0xff]
        %234 = vst [vmem:[#allocation1] ss:$2 sm:$0xff] %v231
        %v235 = vld.sshfl [vmem:[#allocation1] sm:$0xff pattern:$0x75316420]
        %v236 = vld.sshfl [vmem:[#allocation1 + $0x8] sm:$0xff pattern:$0x75316420]
        %vm239 = vcmask 1043456
        %v240 = vsel %vm239, %v235, -inf
        %v241 = vrot.slane %v240, 4
        %v242 = vmax.f32 %v240, %v241
        %v243 = vrot.slane %v242, 2
        %v244 = vmax.f32 %v242, %v243
        %v245 = vrot.slane %v244, 1
        %v246 = vmax.f32 %v244, %v245
        %v247 = vsel %vm239, %v236, -inf
        %v248 = vrot.slane %v247, 4
        %v249 = vmax.f32 %v247, %v248
        %v250 = vrot.slane %v249, 2
        %v251 = vmax.f32 %v249, %v250
        %v252 = vrot.slane %v251, 1
        %v253 = vmax.f32 %v251, %v252
        %v256 = vrot.slane %v253, 4
        %v257 = vsel %vm239, %v246, %v256
        %v259 = vsub.f32 %v231, %v257
        %v260 = vmul.f32 %v259, 1.442695
        %v261 = vpow.pop %v260
        %263 = vst [vmem:[#allocation1] ss:$2 sm:$0xff] %v261
        %v264 = vld.sshfl [vmem:[#allocation1] sm:$0xff pattern:$0x75316420]
        %v265 = vld.sshfl [vmem:[#allocation1 + $0x8] sm:$0xff pattern:$0x75316420]
        %v268 = vsel %vm239, %v264, 0.0
        %v269 = vrot.slane %v268, 4
        %v270 = vadd.f32 %v268, %v269
        %v271 = vrot.slane %v270, 2
        %v272 = vadd.f32 %v270, %v271
        %v273 = vrot.slane %v272, 1
        %v274 = vadd.f32 %v272, %v273
        %v275 = vsel %vm239, %v265, 0.0
        %v276 = vrot.slane %v275, 4
        %v277 = vadd.f32 %v275, %v276
        %v278 = vrot.slane %v277, 2
        %v279 = vadd.f32 %v277, %v278
        %v280 = vrot.slane %v279, 1
        %v281 = vadd.f32 %v279, %v280
        %v282 = vrcp.pop %v274
        %v283 = vmul.f32 %v274, %v282
        %v284 = vsub.f32 1.0, %v283
        %v285 = vmul.f32 %v282, %v284
        %v286 = vadd.f32 %v282, %v285
        %vm287 = vweird.f32 %v274
        %vm288 = vweird.f32 %v282
        %vm289 = vmor %vm287, %vm288
        %v290 = vsel %vm289, %v282, %v286
        %v291 = vand.u32 2147483647, %v274
        %vm292 = vcmp.eq.f32.partialorder %v291, 8.507059e+37
        %v293 = vand.u32 %v274, 2147483648
        %v294 = vor.u32 1.1754944e-38, %v293
        %v295 = vsel %vm292, %v294, %v290
        %v296 = vrcp.pop %v281
        %v297 = vmul.f32 %v281, %v296
        %v298 = vsub.f32 1.0, %v297
        %v299 = vmul.f32 %v296, %v298
        %v300 = vadd.f32 %v296, %v299
        %vm301 = vweird.f32 %v281
        %vm302 = vweird.f32 %v296
        %vm303 = vmor %vm301, %vm302
        %v304 = vsel %vm303, %v296, %v300
        %v305 = vand.u32 2147483647, %v281
        %vm306 = vcmp.eq.f32.partialorder %v305, 8.507059e+37
        %v307 = vand.u32 %v281, 2147483648
        %v308 = vor.u32 1.1754944e-38, %v307
        %v309 = vsel %vm306, %v308, %v304
        %v312 = vrot.slane %v309, 4
        %v313 = vsel %vm239, %v295, %v312
        %v315 = vmul.f32 %v261, %v313
        %v316 = vld [vmem:[#allocation2] sm:$0xff]
        %v317 = vadd.f32 %v316, %v315
        %318 = vst [vmem:[#allocation2] sm:$0xff] %v317
        %s319 = scalar_lea.vmem [#allocation2], 8
        %v320 = vld [vmem:[%s319] sm:$0xff]
        %v321 = vadd.f32 %v320, %v232
        %322 = vst [vmem:[%s319] sm:$0xff] %v321
        %s323 = scalar_lea.vmem [#allocation2], 16
        %v324 = vld [vmem:[%s323] sm:$0xff]
        %v325 = vmul.f32 %v315, %v232
        %v326 = vadd.f32 %v324, %v325
        %327 = vst [vmem:[%s323] sm:$0xff] %v326
        // Predicated region
        $region41: #{tpu_custom_call.1} parent=27 // pred_check
          %p328 = pneg %p224
        $region42: #{tpu_custom_call.1} parent=27 // pred_check_branch
          %330 = sbr.rel (%p328) target = $region44
        $region43: #{tpu_custom_call.1} parent=27 // pred_region
          %v331 = vld [vmem:[#allocation2] sm:$0xff]
          %333 = vst [vmem:[#allocation1] ss:$2 sm:$0xff] %v331
          %v334 = vld.sshfl [vmem:[#allocation1] sm:$0xff pattern:$0x75316420]
          %v335 = vld.sshfl [vmem:[#allocation1 + $0x8] sm:$0xff pattern:$0x75316420]
          %v338 = vsel %vm239, %v334, 0.0
          %v339 = vsel %vm239, %v335, 0.0
          %v340 = vadd.f32 %v338, %v339
          %341 = vadd.xlane.f32.xlu0 %v340
          %v342 = vpop.xlane.xlu0 %341
          %v343 = vrot.slane %v342, 4
          %v344 = vadd.f32 %v342, %v343
          %v345 = vrot.slane %v344, 2
          %v346 = vadd.f32 %v344, %v345
          %v347 = vrot.slane %v346, 1
          %v348 = vadd.f32 %v346, %v347
          %s349 = vtos %v348
          %v350 = vstv %s349
          %v351 = vld [vmem:[%s319] sm:$0xff]
          %353 = vst [vmem:[#allocation1] ss:$2 sm:$0xff] %v351
          %v354 = vld.sshfl [vmem:[#allocation1] sm:$0xff pattern:$0x75316420]
          %v355 = vld.sshfl [vmem:[#allocation1 + $0x8] sm:$0xff pattern:$0x75316420]
          %v358 = vsel %vm239, %v354, 0.0
          %v359 = vsel %vm239, %v355, 0.0
          %v360 = vadd.f32 %v358, %v359
          %361 = vadd.xlane.f32.xlu0 %v360
          %v362 = vpop.xlane.xlu0 %361
          %v363 = vrot.slane %v362, 4
          %v364 = vadd.f32 %v362, %v363
          %v365 = vrot.slane %v364, 2
          %v366 = vadd.f32 %v364, %v365
          %v367 = vrot.slane %v366, 1
          %v368 = vadd.f32 %v366, %v367
          %s369 = vtos %v368
          %v370 = vstv %s369
          %v371 = vld [vmem:[%s323] sm:$0xff]
          %373 = vst [vmem:[#allocation1] ss:$2 sm:$0xff] %v371
          %v374 = vld.sshfl [vmem:[#allocation1] sm:$0xff pattern:$0x75316420]
          %v375 = vld.sshfl [vmem:[#allocation1 + $0x8] sm:$0xff pattern:$0x75316420]
          %v378 = vsel %vm239, %v374, 0.0
          %v379 = vsel %vm239, %v375, 0.0
          %v380 = vadd.f32 %v378, %v379
          %381 = vadd.xlane.f32.xlu0 %v380
          %v382 = vpop.xlane.xlu0 %381
          %v383 = vrot.slane %v382, 4
          %v384 = vadd.f32 %v382, %v383
          %v385 = vrot.slane %v384, 2
          %v386 = vadd.f32 %v384, %v385
          %v387 = vrot.slane %v386, 1
          %v388 = vadd.f32 %v386, %v387
          %s389 = vtos %v388
          %v390 = vstv %s389
          %vm391 = vcmask 1040384
          %v392 = vsel %vm391, %v350, %v370
          %vm393 = vcmask 1041408
          %v394 = vsel %vm393, %v392, %v390
          %395 = vst [vmem:[%s223] sm:$0x7] %v394
        $region44: #{tpu_custom_call.1} parent=27 // pred_fallthru
          _
        %p396 = scmp.lt.s32.totalorder %s23, 1
        %s397 = scalar_select %p396, %s23, 1
        %s398 = smul.addr %s397, 4
        %s399 = scalar_lea.vmem %s2, %s398
        // Predicated region
        $region45: #{tpu_custom_call.1} parent=27 // pred_check
          %p400 = pneg %p105
        $region46: #{tpu_custom_call.1} parent=27 // pred_check_branch
          %402 = sbr.rel (%p400) target = $region48
        $region47: #{tpu_custom_call.1} parent=27 // pred_region
          _
        $region48: #{tpu_custom_call.1} parent=27 // pred_fallthru
          _
      $region28: #{tpu_custom_call.1} parent=5 // pred_fallthru
        _
      %p403 = scmp.le.s32.totalorder 2, %s14
      // Predicated region
      $region49: #{tpu_custom_call.1} parent=5 // pred_check
        %p404 = pneg %p403
      $region50: #{tpu_custom_call.1} parent=5 // pred_check_branch
        %406 = sbr.rel (%p404) target = $region52
      $region51: #{tpu_custom_call.1} parent=5 // pred_region
        %s407 = ssub.s32 %s14, 2
        // Predicated region
        $region53: #{tpu_custom_call.1} parent=51 // pred_check
          %p408 = pneg %p111
        $region54: #{tpu_custom_call.1} parent=51 // pred_check_branch
          %410 = sbr.rel (%p408) target = $region56
        $region55: #{tpu_custom_call.1} parent=51 // pred_region
          %p411 = scmp.lt.s32.totalorder %s25, 1
          %s412 = scalar_select %p411, %s25, 1
          %s413 = smul.addr %s412, 4
          %s414 = scalar_lea.vmem %s2, %s413
        $region56: #{tpu_custom_call.1} parent=51 // pred_fallthru
          _
      $region52: #{tpu_custom_call.1} parent=5 // pred_fallthru
        _
    $region6: #{tpu_custom_call.1} parent=1 // loop_footer
      %s18 = sadd.s32 1, %s14
    $region7: #{tpu_custom_call.1} parent=1 // loop_footer_branch
      %13 = sbr.rel target = $region3
    $region8: #{tpu_custom_call.1} parent=1 // loop_exit
      _
    %415 = vsyncpa [#allocation4], 1
    %s416 = scalar_lea.sflag [#allocation4], 1
    %417 = vsyncpa %s416, 1
    %418 = vsyncpa [#allocation6], 1
    %s419 = scalar_lea.sflag [#allocation6], 1
    %420 = vsyncpa %s419, 1

</llo_original>
